<compile_context>
chip_gen: v7x
topology: tpu7x:2x2x1
jax: 0.10.0
libtpu: 0.0.40
codegen_flags: <defaults>
</compile_context>

<pallas_src>
import functools
import math

import jax
import jax.numpy as jnp
from jax.experimental import pallas as pl
from jax.experimental.pallas import tpu as pltpu

LANE = 128


def _round_up(x, m):
    return ((x + m - 1) // m) * m


def _vmem_limit_bytes():
    """Per-generation VMEM budget (v5e/v6e: 128 MiB physical, v7x: 64 MiB)."""
    try:
        phys = int(pltpu.get_tpu_info().vmem_capacity_bytes)
    except Exception:                      # query unavailable -> assume smallest (v7x)
        phys = 64 * 1024 * 1024
    return max(32 * 1024 * 1024, min((phys * 3) // 4, 96 * 1024 * 1024))


# --------------------------------- kernel ----------------------------------

def pff_kernel(d_true, dp,
               x_ref, vecd_ref, b1_ref, w1_ref, w2_ref, wy_ref, ux_ref, ug_ref,
               out_ref):
    x = x_ref[...]                                  # (Rb, Dp) f32 rows (residual)

    vecd = vecd_ref[...]                            # (4, Dp) f32
    ln_g = vecd[0:1, :]
    ln_b = vecd[1:2, :]
    b2 = vecd[2:3, :]
    g_bz = vecd[3:4, :]

    # LayerNorm(d_model, eps=1e-6).  Lane padding holds zeros, so sums over the
    # padded row divided by the true d_model give the exact mean / E[x^2];
    # ln_g / ln_b are zero-padded so padded lanes of xn stay exactly 0.
    inv_d = 1.0 / d_true
    mu = jnp.sum(x, axis=-1, keepdims=True) * inv_d
    ex2 = jnp.sum(x * x, axis=-1, keepdims=True) * inv_d
    xn = (x - mu) * jax.lax.rsqrt(ex2 - mu * mu + 1e-6) * ln_g + ln_b

    # relu(w_2(relu(w_1(xn))))  -- ReLU after BOTH linears, as in the module.
    # bf16 only at the MXU operands; f32 accumulation, f32 elementwise.
    h1 = jnp.maximum(
        jnp.dot(xn.astype(jnp.bfloat16), w1_ref[...],
                preferred_element_type=jnp.float32) + b1_ref[...], 0.0)
    y = jnp.maximum(
        jnp.dot(h1.astype(jnp.bfloat16), w2_ref[...],
                preferred_element_type=jnp.float32) + b2, 0.0)

    # GRUGate(residual=x, y) with packed weights wy=[w_z|w_r|w_g], ux=[u_z|u_r].
    # Segment boundaries are multiples of 128 lanes -> the slices are free views.
    yp = jnp.dot(y.astype(jnp.bfloat16), wy_ref[...],
                 preferred_element_type=jnp.float32)            # (Rb, 3*Dp)
    xp = jnp.dot(x.astype(jnp.bfloat16), ux_ref[...],
                 preferred_element_type=jnp.float32)            # (Rb, 2*Dp)
    z = jax.nn.sigmoid(yp[:, :dp] + xp[:, :dp] + g_bz)
    r = jax.nn.sigmoid(yp[:, dp:2 * dp] + xp[:, dp:])
    h_hat = jnp.tanh(
        yp[:, 2 * dp:] +
        jnp.dot((r * x).astype(jnp.bfloat16), ug_ref[...],
                preferred_element_type=jnp.float32))
    out_ref[...] = (1.0 - z) * x + z * h_hat


# ----------------------------- param packing --------------------------------

WEIGHT_KEYS = ("w1", "w2", "g_wy", "g_ux", "g_ug")
ARG_ORDER = ("vec_d", "b1") + WEIGHT_KEYS


def pack_params(p):
    """One-time prep: pad to 128-lane multiples, pack GRU weights and the small
    bias/gain vectors, cast matmul weights to bf16."""
    D, H = p["w1"].shape
    Dp, Hp = _round_up(D, LANE), _round_up(H, LANE)

    def pad2(a, rows, cols):
        return jnp.pad(a, ((0, rows - a.shape[0]), (0, cols - a.shape[1])))

    def seg(a):                       # (D, D) GRU weight -> (Dp, Dp)
        return pad2(a, Dp, Dp)

    return {
        # (4, Dp): [ln_g, ln_b, b2, g_bz] -- one resident slab instead of four inputs.
        "vec_d": jnp.concatenate(
            [pad2(p["ln_g"], 1, Dp), pad2(p["ln_b"], 1, Dp),
             pad2(p["b2"], 1, Dp), pad2(p["g_bz"], 1, Dp)], axis=0
        ).astype(jnp.float32),
        "b1": pad2(p["b1"], 1, Hp).astype(jnp.float32),
        "w1": pad2(p["w1"], Dp, Hp).astype(jnp.bfloat16),
        "w2": pad2(p["w2"], Hp, Dp).astype(jnp.bfloat16),
        "g_wy": jnp.concatenate(
            [seg(p["g_wz"]), seg(p["g_wr"]), seg(p["g_wg"])], axis=1
        ).astype(jnp.bfloat16),                                   # (Dp, 3*Dp)
        "g_ux": jnp.concatenate(
            [seg(p["g_uz"]), seg(p["g_ur"])], axis=1
        ).astype(jnp.bfloat16),                                   # (Dp, 2*Dp)
        "g_ug": seg(p["g_ug"]).astype(jnp.bfloat16),              # (Dp, Dp)
        "D": D, "H": H, "Dp": Dp, "Hp": Hp,
    }


# -------------------------------- wrapper -----------------------------------

def positionwise_feed_forward(x, packed, *, row_block=None):
    """x: (..., d_model) -> (..., d_model)."""
    D, Dp, Hp = packed["D"], packed["Dp"], packed["Hp"]
    orig_shape = x.shape
    R = math.prod(orig_shape[:-1])
    x2 = x.reshape(R, D).astype(jnp.float32)
    if Dp != D:
        x2 = jnp.pad(x2, ((0, 0), (0, Dp - D)))      # lane-dense last dim

    vmem_limit = _vmem_limit_bytes()
    weight_bytes = sum(int(packed[k].size) * packed[k].dtype.itemsize
                       for k in WEIGHT_KEYS)

    if row_block is None:
        # Rough f32 live-temporary footprint per row (x, xn, out, h1, y, yp, xp, ...).
        per_row_bytes = 4 * (5 * Dp + 2 * Hp + 3 * Dp + 2 * Dp)
        budget = vmem_limit - 2 * weight_bytes - (8 << 20)   # resident weights (dbl-buf) + slack
        row_block = max(128, min(512, budget // max(per_row_bytes, 1)))
        row_block = (int(row_block) // 16) * 16
    Rb = min(int(row_block), _round_up(R, 16))
    grid = (pl.cdiv(R, Rb),)        # ragged tail: Pallas masks the partial writeback

    row_spec = pl.BlockSpec((Rb, Dp), lambda i: (i, 0))

    def const_spec(a):              # resident (grid-invariant) operand
        return pl.BlockSpec(a.shape, lambda i: (0, 0))

    in_specs = [row_spec] + [const_spec(packed[k]) for k in ARG_ORDER]

    # Advisory cost estimate (helps XLA schedule around the custom call).
    flops = int(R) * (4 * Dp * Hp + 12 * Dp * Dp)
    transcendentals = int(R) * (3 * Dp + 1)
    bytes_accessed = int(R) * Dp * 4 * 2 + int(weight_bytes) + 4 * (4 * Dp + Hp)

    kernel = functools.partial(pff_kernel, D, Dp)
    out = pl.pallas_call(
        kernel,
        out_shape=jax.ShapeDtypeStruct((R, Dp), jnp.float32),
        grid_spec=pltpu.PrefetchScalarGridSpec(
            num_scalar_prefetch=0,
            grid=grid,
            in_specs=in_specs,
            out_specs=row_spec,
        ),
        compiler_params=pltpu.CompilerParams(
            dimension_semantics=("parallel",),
            vmem_limit_bytes=int(vmem_limit)),
        cost_estimate=pl.CostEstimate(flops=flops,
                                      transcendentals=transcendentals,
                                      bytes_accessed=bytes_accessed),
    )(x2, *[packed[k] for k in ARG_ORDER])

    return out[:, :D].reshape(orig_shape)


# --------------------------- pure-JAX reference ------------------------------

def pff_ref(x, p, mxu_dtype=jnp.float32):
    """Reference.  mxu_dtype=bf16 mirrors the kernel's cast-at-the-dot policy
    (f32 accumulation, f32 elementwise); f32 gives the original module math."""
    def mm(a, w):
        return jnp.dot(a.astype(mxu_dtype), w.astype(mxu_dtype),
                       preferred_element_type=jnp.float32)

    mu = jnp.mean(x, axis=-1, keepdims=True)
    ex2 = jnp.mean(x * x, axis=-1, keepdims=True)
    xn = (x - mu) * jax.lax.rsqrt(ex2 - mu * mu + 1e-6) * p["ln_g"][0] + p["ln_b"][0]
    h1 = jnp.maximum(mm(xn, p["w1"]) + p["b1"][0], 0.0)
    y = jnp.maximum(mm(h1, p["w2"]) + p["b2"][0], 0.0)
    z = jax.nn.sigmoid(mm(y, p["g_wz"]) + mm(x, p["g_uz"]) + p["g_bz"][0])
    r = jax.nn.sigmoid(mm(y, p["g_wr"]) + mm(x, p["g_ur"]))
    h_hat = jnp.tanh(mm(y, p["g_wg"]) + mm(r * x, p["g_ug"]))
    return (1.0 - z) * x + z * h_hat


# ----------------------------------- main ------------------------------------

def make_params(key, d_model, d_hid):
    ks = iter(jax.random.split(key, 12))

    def w(shape, scale=0.1):
        return (scale * jax.random.normal(next(ks), shape)).astype(jnp.float32)

    return {
        "ln_g": jnp.ones((1, d_model), jnp.float32),
        "ln_b": jnp.zeros((1, d_model), jnp.float32),
        "w1": w((d_model, d_hid)),
        "b1": w((1, d_hid)),
        "w2": w((d_hid, d_model)),
        "b2": w((1, d_model)),
        "g_wz": w((d_model, d_model)),
        "g_wr": w((d_model, d_model)),
        "g_wg": w((d_model, d_model)),
        "g_uz": w((d_model, d_model)),
        "g_ur": w((d_model, d_model)),
        "g_ug": w((d_model, d_model)),
        "g_bz": jnp.full((1, d_model), -2.0, jnp.float32),   # init_bias(): fill_(-2)
    }


if __name__ == "__main__":
    B, N, d_model, d_hid = 2, 8, 32, 64
    key = jax.random.PRNGKey(0)
    kx, kp = jax.random.split(key)

    x = jax.random.normal(kx, (B, N, d_model), jnp.float32)
    params = make_params(kp, d_model, d_hid)
    packed = pack_params(params)

    out = positionwise_feed_forward(x, packed)
    out = jax.block_until_ready(out)
    assert out.shape == x.shape

    ref_mxu = pff_ref(x, params, mxu_dtype=jnp.bfloat16)   # same matmul-dtype policy
    ref_f32 = pff_ref(x, params, mxu_dtype=jnp.float32)    # original f32 semantics
    err_mxu = float(jnp.max(jnp.abs(out - ref_mxu)))
    err_f32 = float(jnp.max(jnp.abs(out - ref_f32)))
    assert jnp.allclose(out, ref_mxu, atol=5e-3, rtol=5e-3), err_mxu
    assert jnp.allclose(out, ref_f32, atol=5e-2, rtol=5e-2), err_f32
    print("KERNEL_OK")
</pallas_src>

<mosaic_0001>
module attributes {stable_mosaic.version = 11 : i64} {
  func.func @pff_kernel(%arg0: i32, %arg1: memref<16x128xf32, #tpu.memory_space<vmem>>, %arg2: memref<4x128xf32, #tpu.memory_space<vmem>>, %arg3: memref<1x128xf32, #tpu.memory_space<vmem>>, %arg4: memref<128x128xbf16, #tpu.memory_space<vmem>>, %arg5: memref<128x128xbf16, #tpu.memory_space<vmem>>, %arg6: memref<128x384xbf16, #tpu.memory_space<vmem>>, %arg7: memref<128x256xbf16, #tpu.memory_space<vmem>>, %arg8: memref<128x128xbf16, #tpu.memory_space<vmem>>, %arg9: memref<16x128xf32, #tpu.memory_space<vmem>>) attributes {dimension_semantics = [#tpu.dimension_semantics<parallel>], iteration_bounds = array<i64: 1>, scalar_prefetch = 0 : i64, scratch_operands = 0 : i64, tpu.core_type = #tpu.core_type<tc>, window_params = [{transform_indices = @transform_0, window_bounds = array<i64: 16, 128>}, {pipeline_mode = #tpu.pipeline_mode<synchronous>, transform_indices = @transform_1, window_bounds = array<i64: 4, 128>}, {pipeline_mode = #tpu.pipeline_mode<synchronous>, transform_indices = @transform_2, window_bounds = array<i64: 1, 128>}, {pipeline_mode = #tpu.pipeline_mode<synchronous>, transform_indices = @transform_3, window_bounds = array<i64: 128, 128>}, {pipeline_mode = #tpu.pipeline_mode<synchronous>, transform_indices = @transform_4, window_bounds = array<i64: 128, 128>}, {pipeline_mode = #tpu.pipeline_mode<synchronous>, transform_indices = @transform_5, window_bounds = array<i64: 128, 384>}, {pipeline_mode = #tpu.pipeline_mode<synchronous>, transform_indices = @transform_6, window_bounds = array<i64: 128, 256>}, {pipeline_mode = #tpu.pipeline_mode<synchronous>, transform_indices = @transform_7, window_bounds = array<i64: 128, 128>}, {transform_indices = @transform_8, window_bounds = array<i64: 16, 128>}]} {
    %c0 = arith.constant 0 : index
    %c0_0 = arith.constant 0 : index
    %0 = vector.load %arg1[%c0, %c0_0] : memref<16x128xf32, #tpu.memory_space<vmem>>, vector<16x128xf32>
    %c0_1 = arith.constant 0 : index
    %c0_2 = arith.constant 0 : index
    %1 = vector.load %arg2[%c0_1, %c0_2] : memref<4x128xf32, #tpu.memory_space<vmem>>, vector<4x128xf32>
    %2 = vector.extract_strided_slice %1 {offsets = [0, 0], sizes = [1, 128], strides = [1, 1]} : vector<4x128xf32> to vector<1x128xf32>
    %3 = vector.extract_strided_slice %1 {offsets = [1, 0], sizes = [1, 128], strides = [1, 1]} : vector<4x128xf32> to vector<1x128xf32>
    %4 = vector.extract_strided_slice %1 {offsets = [2, 0], sizes = [1, 128], strides = [1, 1]} : vector<4x128xf32> to vector<1x128xf32>
    %5 = vector.extract_strided_slice %1 {offsets = [3, 0], sizes = [1, 128], strides = [1, 1]} : vector<4x128xf32> to vector<1x128xf32>
    %cst = arith.constant dense<0.000000e+00> : vector<16xf32>
    %6 = vector.multi_reduction <add>, %0, %cst [1] : vector<16x128xf32> to vector<16xf32>
    %7 = vector.shape_cast %6 : vector<16xf32> to vector<16x1xf32>
    %cst_3 = arith.constant 3.125000e-02 : f32
    %8 = vector.broadcast %cst_3 : f32 to vector<16x1xf32>
    %9 = arith.mulf %7, %8 : vector<16x1xf32>
    %10 = arith.mulf %0, %0 : vector<16x128xf32>
    %cst_4 = arith.constant dense<0.000000e+00> : vector<16xf32>
    %11 = vector.multi_reduction <add>, %10, %cst_4 [1] : vector<16x128xf32> to vector<16xf32>
    %12 = vector.shape_cast %11 : vector<16xf32> to vector<16x1xf32>
    %cst_5 = arith.constant 3.125000e-02 : f32
    %13 = vector.broadcast %cst_5 : f32 to vector<16x1xf32>
    %14 = arith.mulf %12, %13 : vector<16x1xf32>
    %15 = vector.broadcast %9 : vector<16x1xf32> to vector<16x128xf32>
    %16 = arith.subf %0, %15 : vector<16x128xf32>
    %17 = arith.mulf %9, %9 : vector<16x1xf32>
    %18 = arith.subf %14, %17 : vector<16x1xf32>
    %cst_6 = arith.constant 9.99999997E-7 : f32
    %19 = vector.broadcast %cst_6 : f32 to vector<16x1xf32>
    %20 = arith.addf %18, %19 : vector<16x1xf32>
    %21 = math.rsqrt %20 : vector<16x1xf32>
    %22 = vector.broadcast %21 : vector<16x1xf32> to vector<16x128xf32>
    %23 = arith.mulf %16, %22 : vector<16x128xf32>
    %24 = vector.broadcast %2 : vector<1x128xf32> to vector<16x128xf32>
    %25 = arith.mulf %23, %24 : vector<16x128xf32>
    %26 = vector.broadcast %3 : vector<1x128xf32> to vector<16x128xf32>
    %27 = arith.addf %25, %26 : vector<16x128xf32>
    %28 = arith.truncf %27 : vector<16x128xf32> to vector<16x128xbf16>
    %c0_7 = arith.constant 0 : index
    %c0_8 = arith.constant 0 : index
    %29 = vector.load %arg4[%c0_7, %c0_8] : memref<128x128xbf16, #tpu.memory_space<vmem>>, vector<128x128xbf16>
    %cst_9 = arith.constant dense<0.000000e+00> : vector<16x128xf32>
    %30 = tpu.matmul %28, %29, %cst_9 {dimension_numbers = #tpu.dot_dimension_numbers<[1], [0], [0], [1], [0, 0, 1, 1], [], []>} : vector<16x128xbf16>, vector<128x128xbf16>, vector<16x128xf32> -> vector<16x128xf32>
    %c0_10 = arith.constant 0 : index
    %c0_11 = arith.constant 0 : index
    %31 = vector.load %arg3[%c0_10, %c0_11] : memref<1x128xf32, #tpu.memory_space<vmem>>, vector<1x128xf32>
    %32 = vector.broadcast %31 : vector<1x128xf32> to vector<16x128xf32>
    %33 = arith.addf %30, %32 : vector<16x128xf32>
    %cst_12 = arith.constant 0.000000e+00 : f32
    %34 = vector.broadcast %cst_12 : f32 to vector<16x128xf32>
    %35 = arith.maximumf %33, %34 : vector<16x128xf32>
    %36 = arith.truncf %35 : vector<16x128xf32> to vector<16x128xbf16>
    %c0_13 = arith.constant 0 : index
    %c0_14 = arith.constant 0 : index
    %37 = vector.load %arg5[%c0_13, %c0_14] : memref<128x128xbf16, #tpu.memory_space<vmem>>, vector<128x128xbf16>
    %cst_15 = arith.constant dense<0.000000e+00> : vector<16x128xf32>
    %38 = tpu.matmul %36, %37, %cst_15 {dimension_numbers = #tpu.dot_dimension_numbers<[1], [0], [0], [1], [0, 0, 1, 1], [], []>} : vector<16x128xbf16>, vector<128x128xbf16>, vector<16x128xf32> -> vector<16x128xf32>
    %39 = vector.broadcast %4 : vector<1x128xf32> to vector<16x128xf32>
    %40 = arith.addf %38, %39 : vector<16x128xf32>
    %cst_16 = arith.constant 0.000000e+00 : f32
    %41 = vector.broadcast %cst_16 : f32 to vector<16x128xf32>
    %42 = arith.maximumf %40, %41 : vector<16x128xf32>
    %43 = arith.truncf %42 : vector<16x128xf32> to vector<16x128xbf16>
    %c0_17 = arith.constant 0 : index
    %c0_18 = arith.constant 0 : index
    %44 = vector.load %arg6[%c0_17, %c0_18] : memref<128x384xbf16, #tpu.memory_space<vmem>>, vector<128x384xbf16>
    %cst_19 = arith.constant dense<0.000000e+00> : vector<16x384xf32>
    %45 = tpu.matmul %43, %44, %cst_19 {dimension_numbers = #tpu.dot_dimension_numbers<[1], [0], [0], [1], [0, 0, 1, 1], [], []>} : vector<16x128xbf16>, vector<128x384xbf16>, vector<16x384xf32> -> vector<16x384xf32>
    %46 = arith.truncf %0 : vector<16x128xf32> to vector<16x128xbf16>
    %c0_20 = arith.constant 0 : index
    %c0_21 = arith.constant 0 : index
    %47 = vector.load %arg7[%c0_20, %c0_21] : memref<128x256xbf16, #tpu.memory_space<vmem>>, vector<128x256xbf16>
    %cst_22 = arith.constant dense<0.000000e+00> : vector<16x256xf32>
    %48 = tpu.matmul %46, %47, %cst_22 {dimension_numbers = #tpu.dot_dimension_numbers<[1], [0], [0], [1], [0, 0, 1, 1], [], []>} : vector<16x128xbf16>, vector<128x256xbf16>, vector<16x256xf32> -> vector<16x256xf32>
    %49 = vector.extract_strided_slice %45 {offsets = [0, 0], sizes = [16, 128], strides = [1, 1]} : vector<16x384xf32> to vector<16x128xf32>
    %50 = vector.extract_strided_slice %48 {offsets = [0, 0], sizes = [16, 128], strides = [1, 1]} : vector<16x256xf32> to vector<16x128xf32>
    %51 = arith.addf %49, %50 : vector<16x128xf32>
    %52 = vector.broadcast %5 : vector<1x128xf32> to vector<16x128xf32>
    %53 = arith.addf %51, %52 : vector<16x128xf32>
    %54 = arith.negf %53 : vector<16x128xf32>
    %55 = math.exp %54 : vector<16x128xf32>
    %cst_23 = arith.constant 1.000000e+00 : f32
    %56 = vector.broadcast %cst_23 : f32 to vector<16x128xf32>
    %57 = arith.addf %56, %55 : vector<16x128xf32>
    %58 = arith.divf %56, %57 : vector<16x128xf32>
    %59 = vector.extract_strided_slice %45 {offsets = [0, 128], sizes = [16, 128], strides = [1, 1]} : vector<16x384xf32> to vector<16x128xf32>
    %60 = vector.extract_strided_slice %48 {offsets = [0, 128], sizes = [16, 128], strides = [1, 1]} : vector<16x256xf32> to vector<16x128xf32>
    %61 = arith.addf %59, %60 : vector<16x128xf32>
    %62 = arith.negf %61 : vector<16x128xf32>
    %63 = math.exp %62 : vector<16x128xf32>
    %cst_24 = arith.constant 1.000000e+00 : f32
    %64 = vector.broadcast %cst_24 : f32 to vector<16x128xf32>
    %65 = arith.addf %64, %63 : vector<16x128xf32>
    %66 = arith.divf %64, %65 : vector<16x128xf32>
    %67 = vector.extract_strided_slice %45 {offsets = [0, 256], sizes = [16, 128], strides = [1, 1]} : vector<16x384xf32> to vector<16x128xf32>
    %68 = arith.mulf %66, %0 : vector<16x128xf32>
    %69 = arith.truncf %68 : vector<16x128xf32> to vector<16x128xbf16>
    %c0_25 = arith.constant 0 : index
    %c0_26 = arith.constant 0 : index
    %70 = vector.load %arg8[%c0_25, %c0_26] : memref<128x128xbf16, #tpu.memory_space<vmem>>, vector<128x128xbf16>
    %cst_27 = arith.constant dense<0.000000e+00> : vector<16x128xf32>
    %71 = tpu.matmul %69, %70, %cst_27 {dimension_numbers = #tpu.dot_dimension_numbers<[1], [0], [0], [1], [0, 0, 1, 1], [], []>} : vector<16x128xbf16>, vector<128x128xbf16>, vector<16x128xf32> -> vector<16x128xf32>
    %72 = arith.addf %67, %71 : vector<16x128xf32>
    %73 = math.tanh %72 : vector<16x128xf32>
    %cst_28 = arith.constant 1.000000e+00 : f32
    %74 = vector.broadcast %cst_28 : f32 to vector<16x128xf32>
    %75 = arith.subf %74, %58 : vector<16x128xf32>
    %76 = arith.mulf %75, %0 : vector<16x128xf32>
    %77 = arith.mulf %58, %73 : vector<16x128xf32>
    %78 = arith.addf %76, %77 : vector<16x128xf32>
    %c0_29 = arith.constant 0 : index
    %c0_30 = arith.constant 0 : index
    %79 = vector.load %arg9[%c0_29, %c0_30] : memref<16x128xf32, #tpu.memory_space<vmem>>, vector<16x128xf32>
    tpu.vector_store %arg9[%c0_29, %c0_30], %78 {strides = array<i32>} : memref<16x128xf32, #tpu.memory_space<vmem>>, vector<16x128xf32>,
    return
  }
  func.func @transform_0(%arg0: i32) -> (i32, i32) {
    %c0_i32 = arith.constant 0 : i32
    %c0_i32_0 = arith.constant 0 : i32
    return %arg0, %c0_i32 : i32, i32
  }
  func.func @transform_1(%arg0: i32) -> (i32, i32) {
    %c0_i32 = arith.constant 0 : i32
    %c0_i32_0 = arith.constant 0 : i32
    %c0_i32_1 = arith.constant 0 : i32
    return %c0_i32, %c0_i32_0 : i32, i32
  }
  func.func @transform_2(%arg0: i32) -> (i32, i32) {
    %c0_i32 = arith.constant 0 : i32
    %c0_i32_0 = arith.constant 0 : i32
    %c0_i32_1 = arith.constant 0 : i32
    return %c0_i32, %c0_i32_0 : i32, i32
  }
  func.func @transform_3(%arg0: i32) -> (i32, i32) {
    %c0_i32 = arith.constant 0 : i32
    %c0_i32_0 = arith.constant 0 : i32
    %c0_i32_1 = arith.constant 0 : i32
    return %c0_i32, %c0_i32_0 : i32, i32
  }
  func.func @transform_4(%arg0: i32) -> (i32, i32) {
    %c0_i32 = arith.constant 0 : i32
    %c0_i32_0 = arith.constant 0 : i32
    %c0_i32_1 = arith.constant 0 : i32
    return %c0_i32, %c0_i32_0 : i32, i32
  }
  func.func @transform_5(%arg0: i32) -> (i32, i32) {
    %c0_i32 = arith.constant 0 : i32
    %c0_i32_0 = arith.constant 0 : i32
    %c0_i32_1 = arith.constant 0 : i32
    return %c0_i32, %c0_i32_0 : i32, i32
  }
  func.func @transform_6(%arg0: i32) -> (i32, i32) {
    %c0_i32 = arith.constant 0 : i32
    %c0_i32_0 = arith.constant 0 : i32
    %c0_i32_1 = arith.constant 0 : i32
    return %c0_i32, %c0_i32_0 : i32, i32
  }
  func.func @transform_7(%arg0: i32) -> (i32, i32) {
    %c0_i32 = arith.constant 0 : i32
    %c0_i32_0 = arith.constant 0 : i32
    %c0_i32_1 = arith.constant 0 : i32
    return %c0_i32, %c0_i32_0 : i32, i32
  }
  func.func @transform_8(%arg0: i32) -> (i32, i32) {
    %c0_i32 = arith.constant 0 : i32
    %c0_i32_0 = arith.constant 0 : i32
    return %arg0, %c0_i32 : i32, i32
  }
}

</mosaic_0001>

<llo_original>
// kernel: tpu_custom_call.1
$region0: #{tpu_custom_call.1}
  #allocation0 [shape = 'u32[]', space=smem, size = 0x4, offset = 0x4, fixed_abs, tag = 'smem constant byte address 0x4 - core index']
  #allocation1 [shape = 'u32[144,128]{1,0:T(1,128)}', space=vmem, size = 0x12000, scoped, tag = 'internal scratch']
  %s0 = inlined_call_operand.hbm [shape: f32[16,128], index: 0, kind: input, shape index: {}]
  %s1 = inlined_call_operand.hbm [shape: f32[4,128], index: 1, kind: input, shape index: {}]
  %s2 = inlined_call_operand.vmem [shape: f32[1,128], index: 2, kind: input, shape index: {}]
  %s3 = inlined_call_operand.hbm [shape: bf16[128,128], index: 3, kind: input, shape index: {}]
  %s4 = inlined_call_operand.hbm [shape: bf16[128,128], index: 4, kind: input, shape index: {}]
  %s5 = inlined_call_operand.hbm [shape: bf16[128,384], index: 5, kind: input, shape index: {}]
  %s6 = inlined_call_operand.hbm [shape: bf16[128,256], index: 6, kind: input, shape index: {}]
  %s7 = inlined_call_operand.hbm [shape: bf16[128,128], index: 7, kind: input, shape index: {}]
  %s8 = inlined_call_operand.hbm [shape: f32[16,128], index: 8, kind: output, shape index: {}]
  %s9 = sld [smem:[#allocation0]]
  $region70: #{tpu_custom_call.1} parent=0
    _
  %s11 = ssub.s32 1, %s9
  %s12 = scalar_select 0, %s11, %s9
  $region1: #{tpu_custom_call.1} parent=0
    #allocation2 [shape = 'u8[8192]{0}', space=vmem, size = 0x2000, scoped, tag = 'input window, operand 0, single buffered']
    #allocation3 [shape = 's32[1]{0}', space=sflag, size = 0x4, scoped, tag = 'scoped memory for tpu_custom_call.1']
    #allocation4 [shape = 's32[1]{0}', space=sflag, size = 0x4, scoped, tag = 'scoped memory for tpu_custom_call.1']
    #allocation5 [shape = 'u8[2048]{0}', space=vmem, size = 0x800, scoped, tag = 'input window, operand 1, single buffered']
    #allocation6 [shape = 's32[1]{0}', space=sflag, size = 0x4, scoped, tag = 'scoped memory for tpu_custom_call.1']
    #allocation7 [shape = 'u8[32768]{0}', space=vmem, size = 0x8000, scoped, tag = 'input window, operand 3, single buffered']
    #allocation8 [shape = 'u8[32768]{0}', space=vmem, size = 0x8000, scoped, tag = 'input window, operand 4, single buffered']
    #allocation9 [shape = 's32[1]{0}', space=sflag, size = 0x4, scoped, tag = 'scoped memory for tpu_custom_call.1']
    #allocation10 [shape = 'u8[98304]{0}', space=vmem, size = 0x18000, scoped, tag = 'input window, operand 5, single buffered']
    #allocation11 [shape = 'u8[65536]{0}', space=vmem, size = 0x10000, scoped, tag = 'input window, operand 6, single buffered']
    #allocation12 [shape = 's32[1]{0}', space=sflag, size = 0x4, scoped, tag = 'scoped memory for tpu_custom_call.1']
    #allocation13 [shape = 'u8[32768]{0}', space=vmem, size = 0x8000, scoped, tag = 'input window, operand 7, single buffered']
    #allocation14 [shape = 'u8[8192]{0}', space=vmem, size = 0x2000, scoped, tag = 'output window, operand 0, single buffered']
    %13 = vsyncpa [#allocation3], 0
    %14 = vsyncpa [#allocation6], 0
    %15 = vsyncpa [#allocation9], 0
    %16 = vsyncpa [#allocation12], 0
    %17 = vsyncpa [#allocation4], 0
    // Predicated region
    $region2: #{tpu_custom_call.1} parent=1 // pred_check
      _
    $region3: #{tpu_custom_call.1} parent=1 // pred_check_branch
      %19 = sbr.rel (0) target = $region5
    $region4: #{tpu_custom_call.1} parent=1 // pred_region
      %s21 = ssub.s32 256, 256
      %22 = vsyncadd [#allocation3], %s21
      %s23 = sshll.u32 [#allocation2], 4
      %s24 = int_to_ptr.vmem [resolvable:$true] %s23
      %29 = dma.hbm_to_vmem [thread:$0]  %s0, 256, %s24, [#allocation3], 128, 128, 8
    $region5: #{tpu_custom_call.1} parent=1 // pred_fallthru
      _
    // Predicated region
    $region6: #{tpu_custom_call.1} parent=1 // pred_check
      _
    $region7: #{tpu_custom_call.1} parent=1 // pred_check_branch
      %31 = sbr.rel (0) target = $region9
    $region8: #{tpu_custom_call.1} parent=1 // pred_region
      %s33 = ssub.s32 64, 64
      %34 = vsyncadd [#allocation6], %s33
      %s36 = sshll.u32 [#allocation5], 4
      %s37 = int_to_ptr.vmem [resolvable:$true] %s36
      %39 = dma.hbm_to_vmem [thread:$0]  %s1, 64, %s37, [#allocation6]
    $region9: #{tpu_custom_call.1} parent=1 // pred_fallthru
      _
    // Predicated region
    $region10: #{tpu_custom_call.1} parent=1 // pred_check
      _
    $region11: #{tpu_custom_call.1} parent=1 // pred_check_branch
      %41 = sbr.rel (0) target = $region13
    $region12: #{tpu_custom_call.1} parent=1 // pred_region
      _
    $region13: #{tpu_custom_call.1} parent=1 // pred_fallthru
      _
    // Predicated region
    $region14: #{tpu_custom_call.1} parent=1 // pred_check
      _
    $region15: #{tpu_custom_call.1} parent=1 // pred_check_branch
      %43 = sbr.rel (0) target = $region17
    $region16: #{tpu_custom_call.1} parent=1 // pred_region
      %s45 = ssub.s32 1024, 1024
      %46 = vsyncadd [#allocation6], %s45
      %s47 = sshll.u32 [#allocation7], 4
      %s48 = int_to_ptr.vmem [resolvable:$true] %s47
      %53 = dma.hbm_to_vmem [thread:$0]  %s3, 1024, %s48, [#allocation6], 64, 64, 4
    $region17: #{tpu_custom_call.1} parent=1 // pred_fallthru
      _
    // Predicated region
    $region18: #{tpu_custom_call.1} parent=1 // pred_check
      _
    $region19: #{tpu_custom_call.1} parent=1 // pred_check_branch
      %55 = sbr.rel (0) target = $region21
    $region20: #{tpu_custom_call.1} parent=1 // pred_region
      %s57 = ssub.s32 1024, 1024
      %58 = vsyncadd [#allocation9], %s57
      %s59 = sshll.u32 [#allocation8], 4
      %s60 = int_to_ptr.vmem [resolvable:$true] %s59
      %65 = dma.hbm_to_vmem [thread:$0]  %s4, 1024, %s60, [#allocation9], 64, 64, 4
    $region21: #{tpu_custom_call.1} parent=1 // pred_fallthru
      _
    // Predicated region
    $region22: #{tpu_custom_call.1} parent=1 // pred_check
      _
    $region23: #{tpu_custom_call.1} parent=1 // pred_check_branch
      %67 = sbr.rel (0) target = $region25
    $region24: #{tpu_custom_call.1} parent=1 // pred_region
      %s69 = ssub.s32 3072, 3072
      %70 = vsyncadd [#allocation9], %s69
      %s71 = sshll.u32 [#allocation10], 4
      %s72 = int_to_ptr.vmem [resolvable:$true] %s71
      %77 = dma.hbm_to_vmem [thread:$0]  %s5, 3072, %s72, [#allocation9], 192, 192, 12
    $region25: #{tpu_custom_call.1} parent=1 // pred_fallthru
      _
    // Predicated region
    $region26: #{tpu_custom_call.1} parent=1 // pred_check
      _
    $region27: #{tpu_custom_call.1} parent=1 // pred_check_branch
      %79 = sbr.rel (0) target = $region29
    $region28: #{tpu_custom_call.1} parent=1 // pred_region
      %s81 = ssub.s32 2048, 2048
      %82 = vsyncadd [#allocation12], %s81
      %s83 = sshll.u32 [#allocation11], 4
      %s84 = int_to_ptr.vmem [resolvable:$true] %s83
      %89 = dma.hbm_to_vmem [thread:$0]  %s6, 2048, %s84, [#allocation12], 128, 128, 8
    $region29: #{tpu_custom_call.1} parent=1 // pred_fallthru
      _
    // Predicated region
    $region30: #{tpu_custom_call.1} parent=1 // pred_check
      _
    $region31: #{tpu_custom_call.1} parent=1 // pred_check_branch
      %91 = sbr.rel (0) target = $region33
    $region32: #{tpu_custom_call.1} parent=1 // pred_region
      %s93 = ssub.s32 1024, 1024
      %94 = vsyncadd [#allocation12], %s93
      %s95 = sshll.u32 [#allocation13], 4
      %s96 = int_to_ptr.vmem [resolvable:$true] %s95
      %101 = dma.hbm_to_vmem [thread:$0]  %s7, 1024, %s96, [#allocation12], 64, 64, 4
    $region33: #{tpu_custom_call.1} parent=1 // pred_fallthru
      _
    // Predicated region
    $region34: #{tpu_custom_call.1} parent=1 // pred_check
      _
    $region35: #{tpu_custom_call.1} parent=1 // pred_check_branch
      %103 = sbr.rel (0) target = $region37
    $region36: #{tpu_custom_call.1} parent=1 // pred_region
      %104 = dma.done [#allocation3], 256
    $region37: #{tpu_custom_call.1} parent=1 // pred_fallthru
      _
    // Predicated region
    $region38: #{tpu_custom_call.1} parent=1 // pred_check
      _
    $region39: #{tpu_custom_call.1} parent=1 // pred_check_branch
      %106 = sbr.rel (0) target = $region41
    $region40: #{tpu_custom_call.1} parent=1 // pred_region
      %107 = dma.done [#allocation6], 64
    $region41: #{tpu_custom_call.1} parent=1 // pred_fallthru
      _
    // Predicated region
    $region42: #{tpu_custom_call.1} parent=1 // pred_check
      _
    $region43: #{tpu_custom_call.1} parent=1 // pred_check_branch
      %109 = sbr.rel (0) target = $region45
    $region44: #{tpu_custom_call.1} parent=1 // pred_region
      %110 = dma.done [#allocation6], 1024
    $region45: #{tpu_custom_call.1} parent=1 // pred_fallthru
      _
    // Predicated region
    $region46: #{tpu_custom_call.1} parent=1 // pred_check
      _
    $region47: #{tpu_custom_call.1} parent=1 // pred_check_branch
      %112 = sbr.rel (0) target = $region49
    $region48: #{tpu_custom_call.1} parent=1 // pred_region
      %113 = dma.done [#allocation9], 1024
    $region49: #{tpu_custom_call.1} parent=1 // pred_fallthru
      _
    // Predicated region
    $region50: #{tpu_custom_call.1} parent=1 // pred_check
      _
    $region51: #{tpu_custom_call.1} parent=1 // pred_check_branch
      %115 = sbr.rel (0) target = $region53
    $region52: #{tpu_custom_call.1} parent=1 // pred_region
      %116 = dma.done [#allocation9], 3072
    $region53: #{tpu_custom_call.1} parent=1 // pred_fallthru
      _
    // Predicated region
    $region54: #{tpu_custom_call.1} parent=1 // pred_check
      _
    $region55: #{tpu_custom_call.1} parent=1 // pred_check_branch
      %118 = sbr.rel (0) target = $region57
    $region56: #{tpu_custom_call.1} parent=1 // pred_region
      %119 = dma.done [#allocation12], 2048
    $region57: #{tpu_custom_call.1} parent=1 // pred_fallthru
      _
    // Predicated region
    $region58: #{tpu_custom_call.1} parent=1 // pred_check
      _
    $region59: #{tpu_custom_call.1} parent=1 // pred_check_branch
      %121 = sbr.rel (0) target = $region61
    $region60: #{tpu_custom_call.1} parent=1 // pred_region
      %122 = dma.done [#allocation12], 1024
    $region61: #{tpu_custom_call.1} parent=1 // pred_fallthru
      _
    %v124 = vld [vmem:[#allocation2] sm:$0xff]
    %v125 = vld [vmem:[#allocation2 + $0x8] sm:$0xff]
    %v126 = vld [vmem:[#allocation5] sm:$0xf]
    %127 = vadd.xlane.f32.xlu0 %v124
    %v128 = vpop.xlane.xlu0 %127
    %129 = vadd.xlane.f32.xlu0 %v125
    %v130 = vpop.xlane.xlu0 %129
    %v131 = vmul.f32 %v128, 0.03125
    %v132 = vmul.f32 %v130, 0.03125
    %v133 = vmul.f32 %v124, %v124
    %v134 = vmul.f32 %v125, %v125
    %135 = vadd.xlane.f32.xlu0 %v133
    %v136 = vpop.xlane.xlu0 %135
    %137 = vadd.xlane.f32.xlu0 %v134
    %v138 = vpop.xlane.xlu0 %137
    %v139 = vmul.f32 %v136, 0.03125
    %v140 = vmul.f32 %v138, 0.03125
    %v141 = vsub.f32 %v124, %v131
    %v142 = vsub.f32 %v125, %v132
    %v143 = vmul.f32 %v131, %v131
    %v144 = vmul.f32 %v132, %v132
    %v145 = vsub.f32 %v139, %v143
    %v146 = vsub.f32 %v140, %v144
    %v147 = vadd.f32 %v145, 1e-06
    %v148 = vadd.f32 %v146, 1e-06
    %v149 = vrsqrt.pop %v147
    %v150 = vrsqrt.pop %v148
    %v151 = vmul.f32 %v141, %v149
    %v152 = vmul.f32 %v142, %v150
    %v153 = vlaneseq
    %v154 = vshrl.u32 %v153, 7
    %v155 = vsub.s32 0, %v154
    %v156 = vrot.slane %v126, %v155
    %v157 = vmul.f32 %v151, %v156
    %v158 = vmul.f32 %v152, %v156
    %v159 = vlaneseq
    %v160 = vshrl.u32 %v159, 7
    %v161 = vsub.s32 1, %v160
    %v162 = vrot.slane %v126, %v161
    %v163 = vadd.f32 %v157, %v162
    %v164 = vadd.f32 %v158, %v162
    %v165 = vpack.c.bf16 %v164, %v163
    %v166 = vld [vmem:[#allocation7] sm:$0xf]
    %v167 = vld [vmem:[#allocation7 + $0x4] sm:$0xf]
    %v168 = vld [vmem:[#allocation7 + $0x8] sm:$0xf]
    %v169 = vld [vmem:[#allocation7 + $0xc] sm:$0xf]
    %v170 = vld [vmem:[#allocation7 + $0x10] sm:$0xf]
    %v171 = vld [vmem:[#allocation7 + $0x14] sm:$0xf]
    %v172 = vld [vmem:[#allocation7 + $0x18] sm:$0xf]
    %v173 = vld [vmem:[#allocation7 + $0x1c] sm:$0xf]
    %v174 = vld [vmem:[#allocation7 + $0x20] sm:$0xf]
    %v175 = vld [vmem:[#allocation7 + $0x24] sm:$0xf]
    %v176 = vld [vmem:[#allocation7 + $0x28] sm:$0xf]
    %v177 = vld [vmem:[#allocation7 + $0x2c] sm:$0xf]
    %v178 = vld [vmem:[#allocation7 + $0x30] sm:$0xf]
    %v179 = vld [vmem:[#allocation7 + $0x34] sm:$0xf]
    %v180 = vld [vmem:[#allocation7 + $0x38] sm:$0xf]
    %v181 = vld [vmem:[#allocation7 + $0x3c] sm:$0xf]
    %v182 = vld [vmem:[%s2] sm:$0x1]
    %v184 = vlaneseq
    %v185 = vshrl.u32 %v184, 7
    %v186 = vsub.s32 0, %v185
    %v187 = vrot.slane %v182, %v186
    %v205 = vunpack.c.l.b16 %v166
    %v206 = vunpack.c.l.b16 %v167
    %v207 = vunpack.c.l.b16 %v168
    %v208 = vunpack.c.l.b16 %v169
    %v209 = vunpack.c.l.b16 %v170
    %v210 = vunpack.c.l.b16 %v171
    %v211 = vunpack.c.l.b16 %v172
    %v212 = vunpack.c.l.b16 %v173
    %v213 = vunpack.c.l.b16 %v174
    %v214 = vunpack.c.l.b16 %v175
    %v215 = vunpack.c.l.b16 %v176
    %v216 = vunpack.c.l.b16 %v177
    %v217 = vunpack.c.l.b16 %v178
    %v218 = vunpack.c.l.b16 %v179
    %v219 = vunpack.c.l.b16 %v180
    %v220 = vunpack.c.l.b16 %v181
    %v221 = vpack.c.b16 %v206, %v205
    %v222 = vpack.c.b16 %v208, %v207
    %v223 = vpack.c.b16 %v210, %v209
    %v224 = vpack.c.b16 %v212, %v211
    %v225 = vpack.c.b16 %v214, %v213
    %v226 = vpack.c.b16 %v216, %v215
    %v227 = vpack.c.b16 %v218, %v217
    %v228 = vpack.c.b16 %v220, %v219
    %237 = vmatprep.subr.bf16.mxu0 0
    %238 = vmatpush1.bf16.msra.mxu0 %v221
    %239 = vmatprep.subr.bf16.mxu0 0
    %240 = vmatpush1.bf16.msra.mxu0 %v222
    %241 = vmatprep.subr.bf16.mxu0 0
    %242 = vmatpush1.bf16.msra.mxu0 %v223
    %243 = vmatprep.subr.bf16.mxu0 0
    %244 = vmatpush1.bf16.msra.mxu0 %v224
    %245 = vmatprep.subr.bf16.mxu0 0
    %246 = vmatpush1.bf16.msra.mxu0 %v225
    %247 = vmatprep.subr.bf16.mxu0 0
    %248 = vmatpush1.bf16.msra.mxu0 %v226
    %249 = vmatprep.subr.bf16.mxu0 0
    %250 = vmatpush1.bf16.msra.mxu0 %v227
    %251 = vmatprep.subr.bf16.mxu0 0
    %252 = vmatpush1.bf16.msra.mxu0 %v228
    %253 = vmatprep.subr.bf16.mxu0 0
    %254 = vmatpush1.bf16.msra.mxu0 0
    %255 = vmatprep.subr.bf16.mxu0 0
    %256 = vmatpush1.bf16.msra.mxu0 0
    %257 = vmatprep.subr.bf16.mxu0 0
    %258 = vmatpush1.bf16.msra.mxu0 0
    %259 = vmatprep.subr.bf16.mxu0 0
    %260 = vmatpush1.bf16.msra.mxu0 0
    %261 = vmatprep.subr.bf16.mxu0 0
    %262 = vmatpush1.bf16.msra.mxu0 0
    %263 = vmatprep.subr.bf16.mxu0 0
    %264 = vmatpush1.bf16.msra.mxu0 0
    %265 = vmatprep.subr.bf16.mxu0 0
    %266 = vmatpush1.bf16.msra.mxu0 0
    %267 = vmatprep.subr.bf16.mxu0 0
    %268 = vmatpush1.bf16.msra.mxu0 0
    %269 = vmatprep.mubr.bf16.mxu0 0
    %270 = vmatmul.mubr.bf16.gmra.mrb[0].mxu0 %v165
    %v271 = vpop.f32.mrb[0].mxu0
    %v272 = vadd.f32 %v187, %v271
    %v273 = vpop.f32.mrb[0].mxu0
    %v274 = vpop.f32.mrb[0].mxu0
    %v275 = vadd.f32 %v187, %v274
    %v276 = vpop.f32.mrb[0].mxu0
    %277 = vdwg.mxu0
    %v278 = vmax.f32 %v272, 0.0
    %v279 = vmax.f32 %v275, 0.0
    %v280 = vpack.c.bf16 %v279, %v278
    %v281 = vld [vmem:[#allocation8] sm:$0xf]
    %v282 = vld [vmem:[#allocation8 + $0x4] sm:$0xf]
    %v283 = vld [vmem:[#allocation8 + $0x8] sm:$0xf]
    %v284 = vld [vmem:[#allocation8 + $0xc] sm:$0xf]
    %v285 = vld [vmem:[#allocation8 + $0x10] sm:$0xf]
    %v286 = vld [vmem:[#allocation8 + $0x14] sm:$0xf]
    %v287 = vld [vmem:[#allocation8 + $0x18] sm:$0xf]
    %v288 = vld [vmem:[#allocation8 + $0x1c] sm:$0xf]
    %v289 = vld [vmem:[#allocation8 + $0x20] sm:$0xf]
    %v290 = vld [vmem:[#allocation8 + $0x24] sm:$0xf]
    %v291 = vld [vmem:[#allocation8 + $0x28] sm:$0xf]
    %v292 = vld [vmem:[#allocation8 + $0x2c] sm:$0xf]
    %v293 = vld [vmem:[#allocation8 + $0x30] sm:$0xf]
    %v294 = vld [vmem:[#allocation8 + $0x34] sm:$0xf]
    %v295 = vld [vmem:[#allocation8 + $0x38] sm:$0xf]
    %v296 = vld [vmem:[#allocation8 + $0x3c] sm:$0xf]
    %v297 = vlaneseq
    %v298 = vshrl.u32 %v297, 7
    %v299 = vsub.s32 2, %v298
    %v300 = vrot.slane %v126, %v299
    %v317 = vunpack.c.l.b16 %v281
    %v318 = vunpack.c.l.b16 %v282
    %v319 = vunpack.c.l.b16 %v283
    %v320 = vunpack.c.l.b16 %v284
    %v321 = vunpack.c.l.b16 %v285
    %v322 = vunpack.c.l.b16 %v286
    %v323 = vunpack.c.l.b16 %v287
    %v324 = vunpack.c.l.b16 %v288
    %v325 = vunpack.c.l.b16 %v289
    %v326 = vunpack.c.l.b16 %v290
    %v327 = vunpack.c.l.b16 %v291
    %v328 = vunpack.c.l.b16 %v292
    %v329 = vunpack.c.l.b16 %v293
    %v330 = vunpack.c.l.b16 %v294
    %v331 = vunpack.c.l.b16 %v295
    %v332 = vunpack.c.l.b16 %v296
    %v333 = vpack.c.b16 %v318, %v317
    %v334 = vpack.c.b16 %v320, %v319
    %v335 = vpack.c.b16 %v322, %v321
    %v336 = vpack.c.b16 %v324, %v323
    %v337 = vpack.c.b16 %v326, %v325
    %v338 = vpack.c.b16 %v328, %v327
    %v339 = vpack.c.b16 %v330, %v329
    %v340 = vpack.c.b16 %v332, %v331
    %349 = vmatprep.subr.bf16.mxu0 0
    %350 = vmatpush1.bf16.msra.mxu0 %v333
    %351 = vmatprep.subr.bf16.mxu0 0
    %352 = vmatpush1.bf16.msra.mxu0 %v334
    %353 = vmatprep.subr.bf16.mxu0 0
    %354 = vmatpush1.bf16.msra.mxu0 %v335
    %355 = vmatprep.subr.bf16.mxu0 0
    %356 = vmatpush1.bf16.msra.mxu0 %v336
    %357 = vmatprep.subr.bf16.mxu0 0
    %358 = vmatpush1.bf16.msra.mxu0 %v337
    %359 = vmatprep.subr.bf16.mxu0 0
    %360 = vmatpush1.bf16.msra.mxu0 %v338
    %361 = vmatprep.subr.bf16.mxu0 0
    %362 = vmatpush1.bf16.msra.mxu0 %v339
    %363 = vmatprep.subr.bf16.mxu0 0
    %364 = vmatpush1.bf16.msra.mxu0 %v340
    %365 = vmatprep.subr.bf16.mxu0 0
    %366 = vmatpush1.bf16.msra.mxu0 0
    %367 = vmatprep.subr.bf16.mxu0 0
    %368 = vmatpush1.bf16.msra.mxu0 0
    %369 = vmatprep.subr.bf16.mxu0 0
    %370 = vmatpush1.bf16.msra.mxu0 0
    %371 = vmatprep.subr.bf16.mxu0 0
    %372 = vmatpush1.bf16.msra.mxu0 0
    %373 = vmatprep.subr.bf16.mxu0 0
    %374 = vmatpush1.bf16.msra.mxu0 0
    %375 = vmatprep.subr.bf16.mxu0 0
    %376 = vmatpush1.bf16.msra.mxu0 0
    %377 = vmatprep.subr.bf16.mxu0 0
    %378 = vmatpush1.bf16.msra.mxu0 0
    %379 = vmatprep.subr.bf16.mxu0 0
    %380 = vmatpush1.bf16.msra.mxu0 0
    %381 = vmatprep.mubr.bf16.mxu0 0
    %382 = vmatmul.mubr.bf16.gmra.mrb[0].mxu0 %v280
    %v383 = vpop.f32.mrb[0].mxu0
    %v384 = vadd.f32 %v300, %v383
    %v385 = vpop.f32.mrb[0].mxu0
    %v386 = vpop.f32.mrb[0].mxu0
    %v387 = vadd.f32 %v300, %v386
    %v388 = vpop.f32.mrb[0].mxu0
    %389 = vdwg.mxu0
    %v390 = vmax.f32 %v384, 0.0
    %v391 = vmax.f32 %v387, 0.0
    %v392 = vpack.c.bf16 %v391, %v390
    %v393 = vld [vmem:[#allocation10] sm:$0xff]
    %v394 = vld [vmem:[#allocation10 + $0x8] sm:$0xf]
    %v395 = vld [vmem:[#allocation10 + $0xc] sm:$0xff]
    %v396 = vld [vmem:[#allocation10 + $0x14] sm:$0xf]
    %v397 = vld [vmem:[#allocation10 + $0x18] sm:$0xff]
    %v398 = vld [vmem:[#allocation10 + $0x20] sm:$0xf]
    %v399 = vld [vmem:[#allocation10 + $0x24] sm:$0xff]
    %v400 = vld [vmem:[#allocation10 + $0x2c] sm:$0xf]
    %v401 = vld [vmem:[#allocation10 + $0x30] sm:$0xff]
    %v402 = vld [vmem:[#allocation10 + $0x38] sm:$0xf]
    %v403 = vld [vmem:[#allocation10 + $0x3c] sm:$0xff]
    %v404 = vld [vmem:[#allocation10 + $0x44] sm:$0xf]
    %v405 = vld [vmem:[#allocation10 + $0x48] sm:$0xff]
    %v406 = vld [vmem:[#allocation10 + $0x50] sm:$0xf]
    %v407 = vld [vmem:[#allocation10 + $0x54] sm:$0xff]
    %v408 = vld [vmem:[#allocation10 + $0x5c] sm:$0xf]
    %v409 = vld [vmem:[#allocation10 + $0x60] sm:$0xff]
    %v410 = vld [vmem:[#allocation10 + $0x68] sm:$0xf]
    %v411 = vld [vmem:[#allocation10 + $0x6c] sm:$0xff]
    %v412 = vld [vmem:[#allocation10 + $0x74] sm:$0xf]
    %v413 = vld [vmem:[#allocation10 + $0x78] sm:$0xff]
    %v414 = vld [vmem:[#allocation10 + $0x80] sm:$0xf]
    %v415 = vld [vmem:[#allocation10 + $0x84] sm:$0xff]
    %v416 = vld [vmem:[#allocation10 + $0x8c] sm:$0xf]
    %v417 = vld [vmem:[#allocation10 + $0x90] sm:$0xff]
    %v418 = vld [vmem:[#allocation10 + $0x98] sm:$0xf]
    %v419 = vld [vmem:[#allocation10 + $0x9c] sm:$0xff]
    %v420 = vld [vmem:[#allocation10 + $0xa4] sm:$0xf]
    %v421 = vld [vmem:[#allocation10 + $0xa8] sm:$0xff]
    %v422 = vld [vmem:[#allocation10 + $0xb0] sm:$0xf]
    %v423 = vld [vmem:[#allocation10 + $0xb4] sm:$0xff]
    %v424 = vld [vmem:[#allocation10 + $0xbc] sm:$0xf]
    %v457 = vunpack.c.l.b16 %v393
    %v458 = vunpack.c.h.b16 %v393
    %v459 = vunpack.c.l.b16 %v394
    %v460 = vunpack.c.l.b16 %v395
    %v461 = vunpack.c.h.b16 %v395
    %v462 = vunpack.c.l.b16 %v396
    %v463 = vunpack.c.l.b16 %v397
    %v464 = vunpack.c.h.b16 %v397
    %v465 = vunpack.c.l.b16 %v398
    %v466 = vunpack.c.l.b16 %v399
    %v467 = vunpack.c.h.b16 %v399
    %v468 = vunpack.c.l.b16 %v400
    %v469 = vunpack.c.l.b16 %v401
    %v470 = vunpack.c.h.b16 %v401
    %v471 = vunpack.c.l.b16 %v402
    %v472 = vunpack.c.l.b16 %v403
    %v473 = vunpack.c.h.b16 %v403
    %v474 = vunpack.c.l.b16 %v404
    %v475 = vunpack.c.l.b16 %v405
    %v476 = vunpack.c.h.b16 %v405
    %v477 = vunpack.c.l.b16 %v406
    %v478 = vunpack.c.l.b16 %v407
    %v479 = vunpack.c.h.b16 %v407
    %v480 = vunpack.c.l.b16 %v408
    %v481 = vunpack.c.l.b16 %v409
    %v482 = vunpack.c.h.b16 %v409
    %v483 = vunpack.c.l.b16 %v410
    %v484 = vunpack.c.l.b16 %v411
    %v485 = vunpack.c.h.b16 %v411
    %v486 = vunpack.c.l.b16 %v412
    %v487 = vunpack.c.l.b16 %v413
    %v488 = vunpack.c.h.b16 %v413
    %v489 = vunpack.c.l.b16 %v414
    %v490 = vunpack.c.l.b16 %v415
    %v491 = vunpack.c.h.b16 %v415
    %v492 = vunpack.c.l.b16 %v416
    %v493 = vunpack.c.l.b16 %v417
    %v494 = vunpack.c.h.b16 %v417
    %v495 = vunpack.c.l.b16 %v418
    %v496 = vunpack.c.l.b16 %v419
    %v497 = vunpack.c.h.b16 %v419
    %v498 = vunpack.c.l.b16 %v420
    %v499 = vunpack.c.l.b16 %v421
    %v500 = vunpack.c.h.b16 %v421
    %v501 = vunpack.c.l.b16 %v422
    %v502 = vunpack.c.l.b16 %v423
    %v503 = vunpack.c.h.b16 %v423
    %v504 = vunpack.c.l.b16 %v424
    %v505 = vpack.c.b16 %v460, %v457
    %v506 = vpack.c.b16 %v461, %v458
    %v507 = vpack.c.b16 %v462, %v459
    %v508 = vpack.c.b16 %v466, %v463
    %v509 = vpack.c.b16 %v467, %v464
    %v510 = vpack.c.b16 %v468, %v465
    %v511 = vpack.c.b16 %v472, %v469
    %v512 = vpack.c.b16 %v473, %v470
    %v513 = vpack.c.b16 %v474, %v471
    %v514 = vpack.c.b16 %v478, %v475
    %v515 = vpack.c.b16 %v479, %v476
    %v516 = vpack.c.b16 %v480, %v477
    %v517 = vpack.c.b16 %v484, %v481
    %v518 = vpack.c.b16 %v485, %v482
    %v519 = vpack.c.b16 %v486, %v483
    %v520 = vpack.c.b16 %v490, %v487
    %v521 = vpack.c.b16 %v491, %v488
    %v522 = vpack.c.b16 %v492, %v489
    %v523 = vpack.c.b16 %v496, %v493
    %v524 = vpack.c.b16 %v497, %v494
    %v525 = vpack.c.b16 %v498, %v495
    %v526 = vpack.c.b16 %v502, %v499
    %v527 = vpack.c.b16 %v503, %v500
    %v528 = vpack.c.b16 %v504, %v501
    %553 = vmatprep.subr.bf16.mxu0 %v506
    %554 = vmatpush1.bf16.msra.mxu0 %v505
    %555 = vmatprep.subr.bf16.mxu0 %v509
    %556 = vmatpush1.bf16.msra.mxu0 %v508
    %557 = vmatprep.subr.bf16.mxu0 %v512
    %558 = vmatpush1.bf16.msra.mxu0 %v511
    %559 = vmatprep.subr.bf16.mxu0 %v515
    %560 = vmatpush1.bf16.msra.mxu0 %v514
    %561 = vmatprep.subr.bf16.mxu0 %v518
    %562 = vmatpush1.bf16.msra.mxu0 %v517
    %563 = vmatprep.subr.bf16.mxu0 %v521
    %564 = vmatpush1.bf16.msra.mxu0 %v520
    %565 = vmatprep.subr.bf16.mxu0 %v524
    %566 = vmatpush1.bf16.msra.mxu0 %v523
    %567 = vmatprep.subr.bf16.mxu0 %v527
    %568 = vmatpush1.bf16.msra.mxu0 %v526
    %569 = vmatprep.subr.bf16.mxu0 0
    %570 = vmatpush1.bf16.msra.mxu0 0
    %571 = vmatprep.subr.bf16.mxu0 0
    %572 = vmatpush1.bf16.msra.mxu0 0
    %573 = vmatprep.subr.bf16.mxu0 0
    %574 = vmatpush1.bf16.msra.mxu0 0
    %575 = vmatprep.subr.bf16.mxu0 0
    %576 = vmatpush1.bf16.msra.mxu0 0
    %577 = vmatprep.subr.bf16.mxu0 0
    %578 = vmatpush1.bf16.msra.mxu0 0
    %579 = vmatprep.subr.bf16.mxu0 0
    %580 = vmatpush1.bf16.msra.mxu0 0
    %581 = vmatprep.subr.bf16.mxu0 0
    %582 = vmatpush1.bf16.msra.mxu0 0
    %583 = vmatprep.subr.bf16.mxu0 0
    %584 = vmatpush1.bf16.msra.mxu0 0
    %585 = vmatprep.mubr.bf16.mxu0 0
    %586 = vmatmul.mubr.bf16.gmra.mrb[0].mxu0 %v392
    %v587 = vpop.f32.mrb[0].mxu0
    %v588 = vadd.f32 0.0, %v587
    %v589 = vpop.f32.mrb[0].mxu0
    %v590 = vadd.f32 0.0, %v589
    %v591 = vpop.f32.mrb[0].mxu0
    %v592 = vadd.f32 0.0, %v591
    %v593 = vpop.f32.mrb[0].mxu0
    %v594 = vadd.f32 0.0, %v593
    %595 = vdwg.mxu0
    %596 = vmatprep.subr.bf16.mxu0 0
    %597 = vmatpush1.bf16.msra.mxu0 %v507
    %598 = vmatprep.subr.bf16.mxu0 0
    %599 = vmatpush1.bf16.msra.mxu0 %v510
    %600 = vmatprep.subr.bf16.mxu0 0
    %601 = vmatpush1.bf16.msra.mxu0 %v513
    %602 = vmatprep.subr.bf16.mxu0 0
    %603 = vmatpush1.bf16.msra.mxu0 %v516
    %604 = vmatprep.subr.bf16.mxu0 0
    %605 = vmatpush1.bf16.msra.mxu0 %v519
    %606 = vmatprep.subr.bf16.mxu0 0
    %607 = vmatpush1.bf16.msra.mxu0 %v522
    %608 = vmatprep.subr.bf16.mxu0 0
    %609 = vmatpush1.bf16.msra.mxu0 %v525
    %610 = vmatprep.subr.bf16.mxu0 0
    %611 = vmatpush1.bf16.msra.mxu0 %v528
    %612 = vmatprep.subr.bf16.mxu0 0
    %613 = vmatpush1.bf16.msra.mxu0 0
    %614 = vmatprep.subr.bf16.mxu0 0
    %615 = vmatpush1.bf16.msra.mxu0 0
    %616 = vmatprep.subr.bf16.mxu0 0
    %617 = vmatpush1.bf16.msra.mxu0 0
    %618 = vmatprep.subr.bf16.mxu0 0
    %619 = vmatpush1.bf16.msra.mxu0 0
    %620 = vmatprep.subr.bf16.mxu0 0
    %621 = vmatpush1.bf16.msra.mxu0 0
    %622 = vmatprep.subr.bf16.mxu0 0
    %623 = vmatpush1.bf16.msra.mxu0 0
    %624 = vmatprep.subr.bf16.mxu0 0
    %625 = vmatpush1.bf16.msra.mxu0 0
    %626 = vmatprep.subr.bf16.mxu0 0
    %627 = vmatpush1.bf16.msra.mxu0 0
    %628 = vmatprep.mubr.bf16.mxu0 0
    %629 = vmatmul.mubr.bf16.gmra.mrb[0].mxu0 %v392
    %v630 = vpop.f32.mrb[0].mxu0
    %v631 = vadd.f32 0.0, %v630
    %v632 = vpop.f32.mrb[0].mxu0
    %v633 = vpop.f32.mrb[0].mxu0
    %v634 = vadd.f32 0.0, %v633
    %v635 = vpop.f32.mrb[0].mxu0
    %636 = vdwg.mxu0
    %v637 = vpack.c.bf16 %v125, %v124
    %v638 = vld [vmem:[#allocation11] sm:$0xff]
    %v639 = vld [vmem:[#allocation11 + $0x8] sm:$0xff]
    %v640 = vld [vmem:[#allocation11 + $0x10] sm:$0xff]
    %v641 = vld [vmem:[#allocation11 + $0x18] sm:$0xff]
    %v642 = vld [vmem:[#allocation11 + $0x20] sm:$0xff]
    %v643 = vld [vmem:[#allocation11 + $0x28] sm:$0xff]
    %v644 = vld [vmem:[#allocation11 + $0x30] sm:$0xff]
    %v645 = vld [vmem:[#allocation11 + $0x38] sm:$0xff]
    %v646 = vld [vmem:[#allocation11 + $0x40] sm:$0xff]
    %v647 = vld [vmem:[#allocation11 + $0x48] sm:$0xff]
    %v648 = vld [vmem:[#allocation11 + $0x50] sm:$0xff]
    %v649 = vld [vmem:[#allocation11 + $0x58] sm:$0xff]
    %v650 = vld [vmem:[#allocation11 + $0x60] sm:$0xff]
    %v651 = vld [vmem:[#allocation11 + $0x68] sm:$0xff]
    %v652 = vld [vmem:[#allocation11 + $0x70] sm:$0xff]
    %v653 = vld [vmem:[#allocation11 + $0x78] sm:$0xff]
    %v670 = vunpack.c.l.b16 %v638
    %v671 = vunpack.c.h.b16 %v638
    %v672 = vunpack.c.l.b16 %v639
    %v673 = vunpack.c.h.b16 %v639
    %v674 = vunpack.c.l.b16 %v640
    %v675 = vunpack.c.h.b16 %v640
    %v676 = vunpack.c.l.b16 %v641
    %v677 = vunpack.c.h.b16 %v641
    %v678 = vunpack.c.l.b16 %v642
    %v679 = vunpack.c.h.b16 %v642
    %v680 = vunpack.c.l.b16 %v643
    %v681 = vunpack.c.h.b16 %v643
    %v682 = vunpack.c.l.b16 %v644
    %v683 = vunpack.c.h.b16 %v644
    %v684 = vunpack.c.l.b16 %v645
    %v685 = vunpack.c.h.b16 %v645
    %v686 = vunpack.c.l.b16 %v646
    %v687 = vunpack.c.h.b16 %v646
    %v688 = vunpack.c.l.b16 %v647
    %v689 = vunpack.c.h.b16 %v647
    %v690 = vunpack.c.l.b16 %v648
    %v691 = vunpack.c.h.b16 %v648
    %v692 = vunpack.c.l.b16 %v649
    %v693 = vunpack.c.h.b16 %v649
    %v694 = vunpack.c.l.b16 %v650
    %v695 = vunpack.c.h.b16 %v650
    %v696 = vunpack.c.l.b16 %v651
    %v697 = vunpack.c.h.b16 %v651
    %v698 = vunpack.c.l.b16 %v652
    %v699 = vunpack.c.h.b16 %v652
    %v700 = vunpack.c.l.b16 %v653
    %v701 = vunpack.c.h.b16 %v653
    %v702 = vpack.c.b16 %v672, %v670
    %v703 = vpack.c.b16 %v673, %v671
    %v704 = vpack.c.b16 %v676, %v674
    %v705 = vpack.c.b16 %v677, %v675
    %v706 = vpack.c.b16 %v680, %v678
    %v707 = vpack.c.b16 %v681, %v679
    %v708 = vpack.c.b16 %v684, %v682
    %v709 = vpack.c.b16 %v685, %v683
    %v710 = vpack.c.b16 %v688, %v686
    %v711 = vpack.c.b16 %v689, %v687
    %v712 = vpack.c.b16 %v692, %v690
    %v713 = vpack.c.b16 %v693, %v691
    %v714 = vpack.c.b16 %v696, %v694
    %v715 = vpack.c.b16 %v697, %v695
    %v716 = vpack.c.b16 %v700, %v698
    %v717 = vpack.c.b16 %v701, %v699
    %734 = vmatprep.subr.bf16.mxu0 %v703
    %735 = vmatpush1.bf16.msra.mxu0 %v702
    %736 = vmatprep.subr.bf16.mxu0 %v705
    %737 = vmatpush1.bf16.msra.mxu0 %v704
    %738 = vmatprep.subr.bf16.mxu0 %v707
    %739 = vmatpush1.bf16.msra.mxu0 %v706
    %740 = vmatprep.subr.bf16.mxu0 %v709
    %741 = vmatpush1.bf16.msra.mxu0 %v708
    %742 = vmatprep.subr.bf16.mxu0 %v711
    %743 = vmatpush1.bf16.msra.mxu0 %v710
    %744 = vmatprep.subr.bf16.mxu0 %v713
    %745 = vmatpush1.bf16.msra.mxu0 %v712
    %746 = vmatprep.subr.bf16.mxu0 %v715
    %747 = vmatpush1.bf16.msra.mxu0 %v714
    %748 = vmatprep.subr.bf16.mxu0 %v717
    %749 = vmatpush1.bf16.msra.mxu0 %v716
    %750 = vmatprep.subr.bf16.mxu0 0
    %751 = vmatpush1.bf16.msra.mxu0 0
    %752 = vmatprep.subr.bf16.mxu0 0
    %753 = vmatpush1.bf16.msra.mxu0 0
    %754 = vmatprep.subr.bf16.mxu0 0
    %755 = vmatpush1.bf16.msra.mxu0 0
    %756 = vmatprep.subr.bf16.mxu0 0
    %757 = vmatpush1.bf16.msra.mxu0 0
    %758 = vmatprep.subr.bf16.mxu0 0
    %759 = vmatpush1.bf16.msra.mxu0 0
    %760 = vmatprep.subr.bf16.mxu0 0
    %761 = vmatpush1.bf16.msra.mxu0 0
    %762 = vmatprep.subr.bf16.mxu0 0
    %763 = vmatpush1.bf16.msra.mxu0 0
    %764 = vmatprep.subr.bf16.mxu0 0
    %765 = vmatpush1.bf16.msra.mxu0 0
    %766 = vmatprep.mubr.bf16.mxu0 0
    %767 = vmatmul.mubr.bf16.gmra.mrb[0].mxu0 %v637
    %v768 = vpop.f32.mrb[0].mxu0
    %v769 = vadd.f32 0.0, %v768
    %v770 = vpop.f32.mrb[0].mxu0
    %v771 = vadd.f32 0.0, %v770
    %v772 = vpop.f32.mrb[0].mxu0
    %v773 = vadd.f32 0.0, %v772
    %v774 = vpop.f32.mrb[0].mxu0
    %v775 = vadd.f32 0.0, %v774
    %776 = vdwg.mxu0
    %v777 = vadd.f32 %v588, %v769
    %v778 = vadd.f32 %v592, %v773
    %v779 = vlaneseq
    %v780 = vshrl.u32 %v779, 7
    %v781 = vsub.s32 3, %v780
    %v782 = vrot.slane %v126, %v781
    %v783 = vadd.f32 %v777, %v782
    %v784 = vadd.f32 %v778, %v782
    %v785 = vxor.u32 %v783, 2147483648
    %v786 = vxor.u32 %v784, 2147483648
    %v787 = vmul.f32 %v785, 1.442695
    %v788 = vpow.pop %v787
    %v789 = vmul.f32 %v786, 1.442695
    %v790 = vpow.pop %v789
    %v791 = vadd.f32 %v788, 1.0
    %v792 = vadd.f32 %v790, 1.0
    %v793 = vrcp.pop %v791
    %v794 = vmul.f32 1.0, %v793
    %v795 = vrcp.pop %v792
    %v796 = vmul.f32 1.0, %v795
    %v797 = vadd.f32 %v590, %v771
    %v798 = vadd.f32 %v594, %v775
    %v799 = vxor.u32 %v797, 2147483648
    %v800 = vxor.u32 %v798, 2147483648
    %v801 = vmul.f32 %v799, 1.442695
    %v802 = vpow.pop %v801
    %v803 = vmul.f32 %v800, 1.442695
    %v804 = vpow.pop %v803
    %v805 = vadd.f32 %v802, 1.0
    %v806 = vadd.f32 %v804, 1.0
    %v807 = vrcp.pop %v805
    %v808 = vmul.f32 1.0, %v807
    %v809 = vrcp.pop %v806
    %v810 = vmul.f32 1.0, %v809
    %v811 = vmul.f32 %v808, %v124
    %v812 = vmul.f32 %v810, %v125
    %v813 = vpack.c.bf16 %v812, %v811
    %v814 = vld [vmem:[#allocation13] sm:$0xf]
    %v815 = vld [vmem:[#allocation13 + $0x4] sm:$0xf]
    %v816 = vld [vmem:[#allocation13 + $0x8] sm:$0xf]
    %v817 = vld [vmem:[#allocation13 + $0xc] sm:$0xf]
    %v818 = vld [vmem:[#allocation13 + $0x10] sm:$0xf]
    %v819 = vld [vmem:[#allocation13 + $0x14] sm:$0xf]
    %v820 = vld [vmem:[#allocation13 + $0x18] sm:$0xf]
    %v821 = vld [vmem:[#allocation13 + $0x1c] sm:$0xf]
    %v822 = vld [vmem:[#allocation13 + $0x20] sm:$0xf]
    %v823 = vld [vmem:[#allocation13 + $0x24] sm:$0xf]
    %v824 = vld [vmem:[#allocation13 + $0x28] sm:$0xf]
    %v825 = vld [vmem:[#allocation13 + $0x2c] sm:$0xf]
    %v826 = vld [vmem:[#allocation13 + $0x30] sm:$0xf]
    %v827 = vld [vmem:[#allocation13 + $0x34] sm:$0xf]
    %v828 = vld [vmem:[#allocation13 + $0x38] sm:$0xf]
    %v829 = vld [vmem:[#allocation13 + $0x3c] sm:$0xf]
    %v846 = vunpack.c.l.b16 %v814
    %v847 = vunpack.c.l.b16 %v815
    %v848 = vunpack.c.l.b16 %v816
    %v849 = vunpack.c.l.b16 %v817
    %v850 = vunpack.c.l.b16 %v818
    %v851 = vunpack.c.l.b16 %v819
    %v852 = vunpack.c.l.b16 %v820
    %v853 = vunpack.c.l.b16 %v821
    %v854 = vunpack.c.l.b16 %v822
    %v855 = vunpack.c.l.b16 %v823
    %v856 = vunpack.c.l.b16 %v824
    %v857 = vunpack.c.l.b16 %v825
    %v858 = vunpack.c.l.b16 %v826
    %v859 = vunpack.c.l.b16 %v827
    %v860 = vunpack.c.l.b16 %v828
    %v861 = vunpack.c.l.b16 %v829
    %v862 = vpack.c.b16 %v847, %v846
    %v863 = vpack.c.b16 %v849, %v848
    %v864 = vpack.c.b16 %v851, %v850
    %v865 = vpack.c.b16 %v853, %v852
    %v866 = vpack.c.b16 %v855, %v854
    %v867 = vpack.c.b16 %v857, %v856
    %v868 = vpack.c.b16 %v859, %v858
    %v869 = vpack.c.b16 %v861, %v860
    %878 = vmatprep.subr.bf16.mxu0 0
    %879 = vmatpush1.bf16.msra.mxu0 %v862
    %880 = vmatprep.subr.bf16.mxu0 0
    %881 = vmatpush1.bf16.msra.mxu0 %v863
    %882 = vmatprep.subr.bf16.mxu0 0
    %883 = vmatpush1.bf16.msra.mxu0 %v864
    %884 = vmatprep.subr.bf16.mxu0 0
    %885 = vmatpush1.bf16.msra.mxu0 %v865
    %886 = vmatprep.subr.bf16.mxu0 0
    %887 = vmatpush1.bf16.msra.mxu0 %v866
    %888 = vmatprep.subr.bf16.mxu0 0
    %889 = vmatpush1.bf16.msra.mxu0 %v867
    %890 = vmatprep.subr.bf16.mxu0 0
    %891 = vmatpush1.bf16.msra.mxu0 %v868
    %892 = vmatprep.subr.bf16.mxu0 0
    %893 = vmatpush1.bf16.msra.mxu0 %v869
    %894 = vmatprep.subr.bf16.mxu0 0
    %895 = vmatpush1.bf16.msra.mxu0 0
    %896 = vmatprep.subr.bf16.mxu0 0
    %897 = vmatpush1.bf16.msra.mxu0 0
    %898 = vmatprep.subr.bf16.mxu0 0
    %899 = vmatpush1.bf16.msra.mxu0 0
    %900 = vmatprep.subr.bf16.mxu0 0
    %901 = vmatpush1.bf16.msra.mxu0 0
    %902 = vmatprep.subr.bf16.mxu0 0
    %903 = vmatpush1.bf16.msra.mxu0 0
    %904 = vmatprep.subr.bf16.mxu0 0
    %905 = vmatpush1.bf16.msra.mxu0 0
    %906 = vmatprep.subr.bf16.mxu0 0
    %907 = vmatpush1.bf16.msra.mxu0 0
    %908 = vmatprep.subr.bf16.mxu0 0
    %909 = vmatpush1.bf16.msra.mxu0 0
    %910 = vmatprep.mubr.bf16.mxu0 0
    %911 = vmatmul.mubr.bf16.gmra.mrb[0].mxu0 %v813
    %v912 = vpop.f32.mrb[0].mxu0
    %v913 = vadd.f32 0.0, %v912
    %v914 = vpop.f32.mrb[0].mxu0
    %v915 = vpop.f32.mrb[0].mxu0
    %v916 = vadd.f32 0.0, %v915
    %v917 = vpop.f32.mrb[0].mxu0
    %918 = vdwg.mxu0
    %v919 = vadd.f32 %v631, %v913
    %v920 = vadd.f32 %v634, %v916
    %v921 = vtanh.pop %v919
    %v922 = vtanh.pop %v920
    %v923 = vsub.f32 1.0, %v794
    %v924 = vsub.f32 1.0, %v796
    %v925 = vmul.f32 %v923, %v124
    %v926 = vmul.f32 %v924, %v125
    %v927 = vmul.f32 %v794, %v921
    %v928 = vmul.f32 %v796, %v922
    %v929 = vadd.f32 %v925, %v927
    %v930 = vadd.f32 %v926, %v928
    %931 = vst [vmem:[#allocation14] sm:$0xff] %v929
    %932 = vst [vmem:[#allocation14 + $0x8] sm:$0xff] %v930
    // Predicated region
    $region62: #{tpu_custom_call.1} parent=1 // pred_check
      _
    $region63: #{tpu_custom_call.1} parent=1 // pred_check_branch
      %934 = sbr.rel (0) target = $region65
    $region64: #{tpu_custom_call.1} parent=1 // pred_region
      %s936 = ssub.s32 256, 256
      %937 = vsyncadd [#allocation4], %s936
      %s938 = sshll.u32 [#allocation14], 4
      %s939 = int_to_ptr.vmem [resolvable:$true] %s938
      %944 = dma.vmem_to_hbm [thread:$0]  %s939, 256, %s8, [#allocation4], 128, 128, 8
    $region65: #{tpu_custom_call.1} parent=1 // pred_fallthru
      _
    // Predicated region
    $region66: #{tpu_custom_call.1} parent=1 // pred_check
      _
    $region67: #{tpu_custom_call.1} parent=1 // pred_check_branch
      %946 = sbr.rel (0) target = $region69
    $region68: #{tpu_custom_call.1} parent=1 // pred_region
      %947 = dma.done [#allocation4], 256
    $region69: #{tpu_custom_call.1} parent=1 // pred_fallthru
      _
    %948 = vsyncpa [#allocation3], 1
    %949 = vsyncpa [#allocation6], 1
    %950 = vsyncpa [#allocation9], 1
    %951 = vsyncpa [#allocation12], 1
    %952 = vsyncpa [#allocation4], 1

</llo_original>
